<compile_context>
chip_gen: v5e
topology: v5e:2x2
jax: 0.10.0
libtpu: 0.0.40
codegen_flags: <defaults>
</compile_context>

<pallas_src>
import jax
import jax.numpy as jnp
from jax.experimental import pallas as pl
from jax.experimental.pallas import tpu as pltpu


def _round_up(x, m):
    return (x + m - 1) // m * m


def ffn_kernel(x_ref, w1_ref, b1_ref, w2r_ref, b2_ref, o_ref):
    # Cast the streamed f32 x tile to bf16 on the VPU, matmul on the MXU with
    # f32 accumulation.
    x = x_ref[...].astype(w1_ref.dtype)
    h = jnp.dot(x, w1_ref[...], preferred_element_type=jnp.float32)
    h = jnp.maximum(h + b1_ref[...], 0.0)                       # ReLU, (TB, Hp)
    # fc2 with Dout == 1: VPU multiply + cross-lane (XLU) reduction.
    y = jnp.sum(h * w2r_ref[...], axis=-1, keepdims=True) + b2_ref[0, 0]
    o_ref[...] = jax.nn.sigmoid(y).astype(o_ref.dtype)


def ffn_forward(x, w1, b1, w2, b2, *, compute_dtype=jnp.bfloat16, block_b=512):
    """sigmoid(relu(x @ w1 + b1) @ w2 + b2), batch-tiled Pallas kernel."""
    B, Din = x.shape
    H, Dout = w2.shape
    assert w1.shape == (Din, H) and b1.shape == (1, H) and b2.shape == (1, Dout)
    assert Dout == 1  # FFNModel spec: output_size = 1 (fc2 done on VPU/XLU)

    # --- pad hidden dim to a multiple of 128 (zeros are killed by ReLU and the
    #     matching zero rows of w2 contribute nothing to fc2) ---
    Hp = _round_up(H, 128)
    if Hp != H:
        w1 = jnp.pad(w1, ((0, 0), (0, Hp - H)))
        b1 = jnp.pad(b1, ((0, 0), (0, Hp - H)))
        w2 = jnp.pad(w2, ((0, Hp - H), (0, 0)))
    w2_row = w2.reshape(1, Hp)                       # (1, Hp) row for VPU reduce

    # --- batch tiling (pad batch so it divides evenly into TB-sized tiles) ---
    TB = block_b if B >= block_b else _round_up(B, 8)
    Bp = _round_up(B, TB)
    if Bp != B:
        x = jnp.pad(x, ((0, Bp - B), (0, 0)))        # padded rows sliced off later

    # --- weights: one-time small casts (resident in VMEM across the grid) ---
    w1_c = w1.astype(compute_dtype)
    b1_f = b1.astype(jnp.float32)
    w2_row_f = w2_row.astype(jnp.float32)
    b2_f = b2.astype(jnp.float32)

    # --- explicit VMEM budget (account for (8,128) lane/sublane padding),
    #     capped for v7x's 64 MiB VMEM ---
    din_v = _round_up(Din, 128)
    vmem_limit = (
        2 * TB * din_v * 4                           # double-buffered f32 x tiles
        + 2 * TB * 128 * 4                           # double-buffered out tiles (lane-padded)
        + _round_up(Din, 8) * Hp * 2                 # resident bf16 w1
        + 2 * 8 * Hp * 4                             # resident b1, w2_row
        + 2 * TB * Hp * 4                            # fc1 intermediate headroom
        + (4 << 20)
    )
    vmem_limit = int(min(max(vmem_limit, 16 << 20), 64 << 20))

    out = pl.pallas_call(
        ffn_kernel,
        out_shape=jax.ShapeDtypeStruct((Bp, Dout), jnp.float32),
        grid=(Bp // TB,),
        in_specs=[
            pl.BlockSpec((TB, Din), lambda i: (i, 0)),           # x tile (streamed)
            pl.BlockSpec((Din, Hp), lambda i: (0, 0)),           # w1 (VMEM-resident)
            pl.BlockSpec((1, Hp), lambda i: (0, 0)),             # b1 (VMEM-resident)
            pl.BlockSpec((1, Hp), lambda i: (0, 0)),             # w2 row (resident)
            pl.BlockSpec(memory_space=pltpu.MemorySpace.SMEM),   # b2 scalar in SMEM
        ],
        out_specs=pl.BlockSpec((TB, Dout), lambda i: (i, 0)),
        compiler_params=pltpu.CompilerParams(
            dimension_semantics=("parallel",),
            vmem_limit_bytes=vmem_limit,
        ),
    )(x, w1_c, b1_f, w2_row_f, b2_f)

    return out[:B]


def init_params(key, input_size, hidden_size, output_size):
    k1, k2, k3, k4 = jax.random.split(key, 4)
    # PyTorch nn.Linear default init: U(-1/sqrt(fan_in), 1/sqrt(fan_in))
    lim1 = 1.0 / jnp.sqrt(input_size)
    lim2 = 1.0 / jnp.sqrt(hidden_size)
    w1 = jax.random.uniform(k1, (input_size, hidden_size), jnp.float32, -lim1, lim1)
    b1 = jax.random.uniform(k2, (1, hidden_size), jnp.float32, -lim1, lim1)
    w2 = jax.random.uniform(k3, (hidden_size, output_size), jnp.float32, -lim2, lim2)
    b2 = jax.random.uniform(k4, (1, output_size), jnp.float32, -lim2, lim2)
    return w1, b1, w2, b2


def _reference(x, w1, b1, w2, b2):
    return jax.nn.sigmoid(jnp.maximum(x @ w1 + b1, 0.0) @ w2 + b2)


if __name__ == "__main__":
    # CSV-derived input_size is unknown; pick a small stand-in consistent with
    # the module's forward. hidden_size=324 as in the original script.
    # TODO(synk): real input_size comes from feature_label_data_DT.csv (unavailable).
    input_size = 32
    hidden_size = 324
    output_size = 1

    key = jax.random.PRNGKey(0)
    kx, kp, kx2 = jax.random.split(key, 3)
    w1, b1, w2, b2 = init_params(kp, input_size, hidden_size, output_size)

    # Test 1: small batch (single tile).
    batch = 16
    x = jax.random.normal(kx, (batch, input_size), jnp.float32)
    out = jax.block_until_ready(ffn_forward(x, w1, b1, w2, b2))
    ref = _reference(x, w1, b1, w2, b2)
    assert out.shape == (batch, output_size)
    # bf16 MXU inputs -> tolerance loosened vs. the f32 reference.
    assert jnp.allclose(out, ref, atol=2e-2, rtol=2e-2)

    # Test 2: batch that is not a multiple of the tile (exercises padding + tiling).
    batch2 = 1040
    x2 = jax.random.normal(kx2, (batch2, input_size), jnp.float32)
    out2 = jax.block_until_ready(ffn_forward(x2, w1, b1, w2, b2))
    ref2 = _reference(x2, w1, b1, w2, b2)
    assert out2.shape == (batch2, output_size)
    assert jnp.allclose(out2, ref2, atol=2e-2, rtol=2e-2)

    print("KERNEL_OK")
</pallas_src>

<mosaic_0001>
module attributes {stable_mosaic.version = 11 : i64} {
  func.func @ffn_kernel(%arg0: i32, %arg1: memref<16x32xf32, #tpu.memory_space<vmem>>, %arg2: memref<32x384xbf16, #tpu.memory_space<vmem>>, %arg3: memref<1x384xf32, #tpu.memory_space<vmem>>, %arg4: memref<1x384xf32, #tpu.memory_space<vmem>>, %arg5: memref<1x1xf32, #tpu.memory_space<smem>>, %arg6: memref<16x1xf32, #tpu.memory_space<vmem>>) attributes {dimension_semantics = [#tpu.dimension_semantics<parallel>], iteration_bounds = array<i64: 1>, scalar_prefetch = 0 : i64, scratch_operands = 0 : i64, tpu.core_type = #tpu.core_type<tc>, window_params = [{transform_indices = @transform_0, window_bounds = array<i64: 16, 32>}, {pipeline_mode = #tpu.pipeline_mode<synchronous>, transform_indices = @transform_1, window_bounds = array<i64: 32, 384>}, {pipeline_mode = #tpu.pipeline_mode<synchronous>, transform_indices = @transform_2, window_bounds = array<i64: 1, 384>}, {pipeline_mode = #tpu.pipeline_mode<synchronous>, transform_indices = @transform_3, window_bounds = array<i64: 1, 384>}, {transform_indices = @transform_4, window_bounds = array<i64: 1, 1>}, {transform_indices = @transform_5, window_bounds = array<i64: 16, 1>}]} {
    %c0 = arith.constant 0 : index
    %c0_0 = arith.constant 0 : index
    %0 = vector.load %arg1[%c0, %c0_0] : memref<16x32xf32, #tpu.memory_space<vmem>>, vector<16x32xf32>
    %1 = arith.truncf %0 : vector<16x32xf32> to vector<16x32xbf16>
    %c0_1 = arith.constant 0 : index
    %c0_2 = arith.constant 0 : index
    %2 = vector.load %arg2[%c0_1, %c0_2] : memref<32x384xbf16, #tpu.memory_space<vmem>>, vector<32x384xbf16>
    %cst = arith.constant dense<0.000000e+00> : vector<16x384xf32>
    %3 = tpu.matmul %1, %2, %cst {dimension_numbers = #tpu.dot_dimension_numbers<[1], [0], [0], [1], [0, 0, 1, 1], [], []>} : vector<16x32xbf16>, vector<32x384xbf16>, vector<16x384xf32> -> vector<16x384xf32>
    %c0_3 = arith.constant 0 : index
    %c0_4 = arith.constant 0 : index
    %4 = vector.load %arg3[%c0_3, %c0_4] : memref<1x384xf32, #tpu.memory_space<vmem>>, vector<1x384xf32>
    %5 = vector.broadcast %4 : vector<1x384xf32> to vector<16x384xf32>
    %6 = arith.addf %3, %5 : vector<16x384xf32>
    %cst_5 = arith.constant 0.000000e+00 : f32
    %7 = vector.broadcast %cst_5 : f32 to vector<16x384xf32>
    %8 = arith.maximumf %6, %7 : vector<16x384xf32>
    %c0_6 = arith.constant 0 : index
    %c0_7 = arith.constant 0 : index
    %9 = vector.load %arg4[%c0_6, %c0_7] : memref<1x384xf32, #tpu.memory_space<vmem>>, vector<1x384xf32>
    %10 = vector.broadcast %9 : vector<1x384xf32> to vector<16x384xf32>
    %11 = arith.mulf %8, %10 : vector<16x384xf32>
    %cst_8 = arith.constant dense<0.000000e+00> : vector<16xf32>
    %12 = vector.multi_reduction <add>, %11, %cst_8 [1] : vector<16x384xf32> to vector<16xf32>
    %13 = vector.shape_cast %12 : vector<16xf32> to vector<16x1xf32>
    %c0_9 = arith.constant 0 : index
    %c0_10 = arith.constant 0 : index
    %14 = memref.load %arg5[%c0_9, %c0_10] : memref<1x1xf32, #tpu.memory_space<smem>>
    %15 = vector.broadcast %14 : f32 to vector<16x1xf32>
    %16 = arith.addf %13, %15 : vector<16x1xf32>
    %17 = arith.negf %16 : vector<16x1xf32>
    %18 = math.exp %17 : vector<16x1xf32>
    %cst_11 = arith.constant 1.000000e+00 : f32
    %19 = vector.broadcast %cst_11 : f32 to vector<16x1xf32>
    %20 = arith.addf %19, %18 : vector<16x1xf32>
    %21 = arith.divf %19, %20 : vector<16x1xf32>
    %c0_12 = arith.constant 0 : index
    %c0_13 = arith.constant 0 : index
    %22 = vector.load %arg6[%c0_12, %c0_13] : memref<16x1xf32, #tpu.memory_space<vmem>>, vector<16x1xf32>
    tpu.vector_store %arg6[%c0_12, %c0_13], %21 {strides = array<i32>} : memref<16x1xf32, #tpu.memory_space<vmem>>, vector<16x1xf32>,
    return
  }
  func.func @transform_0(%arg0: i32) -> (i32, i32) {
    %c0_i32 = arith.constant 0 : i32
    %c0_i32_0 = arith.constant 0 : i32
    return %arg0, %c0_i32 : i32, i32
  }
  func.func @transform_1(%arg0: i32) -> (i32, i32) {
    %c0_i32 = arith.constant 0 : i32
    %c0_i32_0 = arith.constant 0 : i32
    %c0_i32_1 = arith.constant 0 : i32
    return %c0_i32, %c0_i32_0 : i32, i32
  }
  func.func @transform_2(%arg0: i32) -> (i32, i32) {
    %c0_i32 = arith.constant 0 : i32
    %c0_i32_0 = arith.constant 0 : i32
    %c0_i32_1 = arith.constant 0 : i32
    return %c0_i32, %c0_i32_0 : i32, i32
  }
  func.func @transform_3(%arg0: i32) -> (i32, i32) {
    %c0_i32 = arith.constant 0 : i32
    %c0_i32_0 = arith.constant 0 : i32
    %c0_i32_1 = arith.constant 0 : i32
    return %c0_i32, %c0_i32_0 : i32, i32
  }
  func.func @transform_4(%arg0: i32) -> (i32, i32) {
    %c0_i32 = arith.constant 0 : i32
    %c0_i32_0 = arith.constant 0 : i32
    %c0_i32_1 = arith.constant 0 : i32
    return %c0_i32, %c0_i32_0 : i32, i32
  }
  func.func @transform_5(%arg0: i32) -> (i32, i32) {
    %c0_i32 = arith.constant 0 : i32
    %c0_i32_0 = arith.constant 0 : i32
    return %arg0, %c0_i32 : i32, i32
  }
}

</mosaic_0001>

<llo_original>
// kernel: tpu_custom_call.1
$region0: #{tpu_custom_call.1}
  #allocation0 [shape = 'u32[]', space=smem, size = 0x4, offset = 0x4, fixed_abs, tag = 'smem constant byte address 0x4 - core index']
  #allocation1 [shape = 'u32[72,128]{1,0:T(1,128)}', space=vmem, size = 0x9000, scoped, tag = 'internal scratch']
  #allocation2 [shape = 'f32[1,1]{1,0:T(1,128)S(6)}', space=smem, size = 0x200, scoped, tag = 'scoped memory for tpu_custom_call.1']
  %s0 = inlined_call_operand.hbm [shape: f32[16,32], index: 0, kind: input, shape index: {}]
  %s1 = inlined_call_operand.hbm [shape: bf16[32,384], index: 1, kind: input, shape index: {}]
  %s2 = inlined_call_operand.vmem [shape: f32[1,384], index: 2, kind: input, shape index: {}]
  %s3 = inlined_call_operand.hbm [shape: f32[1,384], index: 3, kind: input, shape index: {}]
  %s4 = inlined_call_operand.<no memory space> [shape: f32[1,1], index: 4, kind: input, shape index: {}]
  %s5 = inlined_call_operand.vmem [shape: f32[16,1], index: 5, kind: output, shape index: {}]
  %s6 = sld [smem:[#allocation0]]
  $region42: #{tpu_custom_call.1} parent=0
    _
  %s8 = ssub.s32 1, %s6
  %s9 = scalar_select 0, %s8, %s6
  %10 = sst [smem:[#allocation2]] %s4
  $region1: #{tpu_custom_call.1} parent=0
    #allocation3 [shape = 'u8[8192]{0}', space=vmem, size = 0x2000, scoped, tag = 'input window, operand 0, single buffered']
    #allocation4 [shape = 's32[1]{0}', space=sflag, size = 0x4, scoped, tag = 'scoped memory for tpu_custom_call.1']
    #allocation5 [shape = 'u8[24576]{0}', space=vmem, size = 0x6000, scoped, tag = 'input window, operand 1, single buffered']
    #allocation6 [shape = 's32[1]{0}', space=sflag, size = 0x4, scoped, tag = 'scoped memory for tpu_custom_call.1']
    #allocation7 [shape = 'u8[1536]{0}', space=vmem, size = 0x800, scoped, tag = 'input window, operand 3, single buffered']
    %11 = vsyncpa [#allocation4], 0
    %12 = vsyncpa [#allocation6], 0
    // Predicated region
    $region2: #{tpu_custom_call.1} parent=1 // pred_check
      _
    $region3: #{tpu_custom_call.1} parent=1 // pred_check_branch
      %14 = sbr.rel (0) target = $region5
    $region4: #{tpu_custom_call.1} parent=1 // pred_region
      %16 = vsyncadd [#allocation4], 0
      %s17 = sshll.u32 %s0, 4
      %s18 = int_to_ptr.hbm [resolvable:$true] %s17
      %s19 = sshll.u32 [#allocation3], 4
      %s20 = int_to_ptr.vmem [resolvable:$true] %s19
      %25 = dma.hbm_to_vmem [thread:$0]  %s18, 256, %s20, [#allocation4], 128, 128, 8
    $region5: #{tpu_custom_call.1} parent=1 // pred_fallthru
      _
    // Predicated region
    $region6: #{tpu_custom_call.1} parent=1 // pred_check
      _
    $region7: #{tpu_custom_call.1} parent=1 // pred_check_branch
      %27 = sbr.rel (0) target = $region9
    $region8: #{tpu_custom_call.1} parent=1 // pred_region
      %29 = vsyncadd [#allocation6], 0
      %s30 = sshll.u32 %s1, 4
      %s31 = int_to_ptr.hbm [resolvable:$true] %s30
      %s32 = sshll.u32 [#allocation5], 4
      %s33 = int_to_ptr.vmem [resolvable:$true] %s32
      %38 = dma.hbm_to_vmem [thread:$0]  %s31, 768, %s33, [#allocation6], 192, 192, 12
    $region9: #{tpu_custom_call.1} parent=1 // pred_fallthru
      _
    // Predicated region
    $region10: #{tpu_custom_call.1} parent=1 // pred_check
      _
    $region11: #{tpu_custom_call.1} parent=1 // pred_check_branch
      %40 = sbr.rel (0) target = $region13
    $region12: #{tpu_custom_call.1} parent=1 // pred_region
      _
    $region13: #{tpu_custom_call.1} parent=1 // pred_fallthru
      _
    // Predicated region
    $region14: #{tpu_custom_call.1} parent=1 // pred_check
      _
    $region15: #{tpu_custom_call.1} parent=1 // pred_check_branch
      %42 = sbr.rel (0) target = $region17
    $region16: #{tpu_custom_call.1} parent=1 // pred_region
      %44 = vsyncadd [#allocation6], 0
      %s46 = sshll.u32 %s3, 4
      %s47 = int_to_ptr.hbm [resolvable:$true] %s46
      %s48 = sshll.u32 [#allocation7], 4
      %s49 = int_to_ptr.vmem [resolvable:$true] %s48
      %51 = dma.hbm_to_vmem [thread:$0]  %s47, 48, %s49, [#allocation6]
    $region17: #{tpu_custom_call.1} parent=1 // pred_fallthru
      _
    // Predicated region
    $region18: #{tpu_custom_call.1} parent=1 // pred_check
      _
    $region19: #{tpu_custom_call.1} parent=1 // pred_check_branch
      %53 = sbr.rel (0) target = $region21
    $region20: #{tpu_custom_call.1} parent=1 // pred_region
      _
    $region21: #{tpu_custom_call.1} parent=1 // pred_fallthru
      _
    // Predicated region
    $region22: #{tpu_custom_call.1} parent=1 // pred_check
      _
    $region23: #{tpu_custom_call.1} parent=1 // pred_check_branch
      %55 = sbr.rel (0) target = $region25
    $region24: #{tpu_custom_call.1} parent=1 // pred_region
      %57 = dma.done [#allocation4], 256
    $region25: #{tpu_custom_call.1} parent=1 // pred_fallthru
      _
    // Predicated region
    $region26: #{tpu_custom_call.1} parent=1 // pred_check
      _
    $region27: #{tpu_custom_call.1} parent=1 // pred_check_branch
      %59 = sbr.rel (0) target = $region29
    $region28: #{tpu_custom_call.1} parent=1 // pred_region
      %61 = dma.done [#allocation6], 768
    $region29: #{tpu_custom_call.1} parent=1 // pred_fallthru
      _
    // Predicated region
    $region30: #{tpu_custom_call.1} parent=1 // pred_check
      _
    $region31: #{tpu_custom_call.1} parent=1 // pred_check_branch
      %63 = sbr.rel (0) target = $region33
    $region32: #{tpu_custom_call.1} parent=1 // pred_region
      %65 = dma.done [#allocation6], 48
    $region33: #{tpu_custom_call.1} parent=1 // pred_fallthru
      _
    %v67 = vld [vmem:[#allocation3] sm:$0xff]
    %v68 = vld [vmem:[#allocation3 + $0x8] sm:$0xff]
    %v69 = vpack.c.bf16 %v68, %v67
    %v70 = vld [vmem:[#allocation5] sm:$0xff]
    %v71 = vld [vmem:[#allocation5 + $0x8] sm:$0xf]
    %v72 = vld [vmem:[#allocation5 + $0xc] sm:$0xff]
    %v73 = vld [vmem:[#allocation5 + $0x14] sm:$0xf]
    %v74 = vld [vmem:[#allocation5 + $0x18] sm:$0xff]
    %v75 = vld [vmem:[#allocation5 + $0x20] sm:$0xf]
    %v76 = vld [vmem:[#allocation5 + $0x24] sm:$0xff]
    %v77 = vld [vmem:[#allocation5 + $0x2c] sm:$0xf]
    %v78 = vld [vmem:[%s2] sm:$0x7]
    %v80 = vperm.slane %v78, 0
    %v81 = vperm.slane %v78, 1
    %v82 = vperm.slane %v78, 2
    %v94 = vunpack.c.l.b16 %v70
    %v95 = vunpack.c.h.b16 %v70
    %v96 = vunpack.c.l.b16 %v71
    %v97 = vunpack.c.l.b16 %v72
    %v98 = vunpack.c.h.b16 %v72
    %v99 = vunpack.c.l.b16 %v73
    %v100 = vunpack.c.l.b16 %v74
    %v101 = vunpack.c.h.b16 %v74
    %v102 = vunpack.c.l.b16 %v75
    %v103 = vunpack.c.l.b16 %v76
    %v104 = vunpack.c.h.b16 %v76
    %v105 = vunpack.c.l.b16 %v77
    %v106 = vpack.c.b16 %v97, %v94
    %v107 = vpack.c.b16 %v98, %v95
    %v108 = vpack.c.b16 %v99, %v96
    %v109 = vpack.c.b16 %v103, %v100
    %v110 = vpack.c.b16 %v104, %v101
    %v111 = vpack.c.b16 %v105, %v102
    %vm118 = vcmask 261120
    %v120 = vsel %vm118, %v69, 0
    %122 = vmatpush.bf16.msra.mxu0 0
    %123 = vmatpush.bf16.msra.mxu0 0
    %124 = vmatpush.bf16.msra.mxu0 0
    %125 = vmatpush.bf16.msra.mxu0 0
    %126 = vmatpush.bf16.msra.mxu0 0
    %127 = vmatpush.bf16.msra.mxu0 0
    %128 = vmatpush.bf16.msra.mxu0 %v109
    %129 = vmatpush.bf16.msra.mxu0 %v106
    %130 = vmatmul.bf16.gmra.mxu0 %v120
    %v131 = vpop.f32.mrf.mxu0
    %v132 = vadd.f32 %v80, %v131
    %v133 = vpop.f32.mrf.mxu0
    %v134 = vadd.f32 %v80, %v133
    %135 = vdwg.mxu0
    %136 = vmatpush.bf16.msra.mxu0 0
    %137 = vmatpush.bf16.msra.mxu0 0
    %138 = vmatpush.bf16.msra.mxu0 0
    %139 = vmatpush.bf16.msra.mxu0 0
    %140 = vmatpush.bf16.msra.mxu0 0
    %141 = vmatpush.bf16.msra.mxu0 0
    %142 = vmatpush.bf16.msra.mxu0 %v110
    %143 = vmatpush.bf16.msra.mxu0 %v107
    %144 = vmatmul.bf16.gmra.mxu0 %v120
    %v145 = vpop.f32.mrf.mxu0
    %v146 = vadd.f32 %v81, %v145
    %v147 = vpop.f32.mrf.mxu0
    %v148 = vadd.f32 %v81, %v147
    %149 = vdwg.mxu0
    %150 = vmatpush.bf16.msra.mxu0 0
    %151 = vmatpush.bf16.msra.mxu0 0
    %152 = vmatpush.bf16.msra.mxu0 0
    %153 = vmatpush.bf16.msra.mxu0 0
    %154 = vmatpush.bf16.msra.mxu0 0
    %155 = vmatpush.bf16.msra.mxu0 0
    %156 = vmatpush.bf16.msra.mxu0 %v111
    %157 = vmatpush.bf16.msra.mxu0 %v108
    %158 = vmatmul.bf16.gmra.mxu0 %v120
    %v159 = vpop.f32.mrf.mxu0
    %v160 = vadd.f32 %v82, %v159
    %v161 = vpop.f32.mrf.mxu0
    %v162 = vadd.f32 %v82, %v161
    %163 = vdwg.mxu0
    %v164 = vmax.f32 %v132, 0.0
    %v165 = vmax.f32 %v146, 0.0
    %v166 = vmax.f32 %v160, 0.0
    %v167 = vmax.f32 %v134, 0.0
    %v168 = vmax.f32 %v148, 0.0
    %v169 = vmax.f32 %v162, 0.0
    %v170 = vld [vmem:[#allocation7] sm:$0x7]
    %v172 = vperm.slane %v170, 0
    %v173 = vperm.slane %v170, 1
    %v174 = vperm.slane %v170, 2
    %v178 = vmul.f32 %v164, %v172
    %v179 = vmul.f32 %v165, %v173
    %v180 = vmul.f32 %v166, %v174
    %v181 = vmul.f32 %v167, %v172
    %v182 = vmul.f32 %v168, %v173
    %v183 = vmul.f32 %v169, %v174
    %v184 = vadd.f32 %v178, %v179
    %v185 = vadd.f32 %v184, %v180
    %186 = vadd.xlane.f32.xlu0 %v185
    %v187 = vpop.xlane.xlu0 %186
    %v188 = vadd.f32 %v181, %v182
    %v189 = vadd.f32 %v188, %v183
    %190 = vadd.xlane.f32.xlu0 %v189
    %v191 = vpop.xlane.xlu0 %190
    %s192 = sld [smem:[#allocation2]]
    %v193 = vstv %s192
    %v194 = vadd.f32 %v187, %v193
    %v195 = vadd.f32 %v191, %v193
    %v196 = vxor.u32 %v194, 2147483648
    %v197 = vxor.u32 %v195, 2147483648
    %v198 = vmul.f32 %v196, 1.442695
    %v199 = vpow.pop %v198
    %v200 = vmul.f32 %v197, 1.442695
    %v201 = vpow.pop %v200
    %v202 = vadd.f32 %v199, 1.0
    %v203 = vadd.f32 %v201, 1.0
    %v204 = vrcp.pop %v202
    %v205 = vmul.f32 %v202, %v204
    %v206 = vsub.f32 1.0, %v205
    %v207 = vmul.f32 %v204, %v206
    %v208 = vadd.f32 %v204, %v207
    %vm209 = vweird.f32 %v202
    %vm210 = vweird.f32 %v204
    %vm211 = vmor %vm209, %vm210
    %v212 = vsel %vm211, %v204, %v208
    %v213 = vand.u32 2147483647, %v202
    %vm214 = vcmp.eq.f32.partialorder %v213, 8.507059e+37
    %v215 = vand.u32 %v202, 2147483648
    %v216 = vor.u32 1.1754944e-38, %v215
    %v217 = vsel %vm214, %v216, %v212
    %v218 = vmul.f32 1.0, %v217
    %v219 = vrcp.pop %v203
    %v220 = vmul.f32 %v203, %v219
    %v221 = vsub.f32 1.0, %v220
    %v222 = vmul.f32 %v219, %v221
    %v223 = vadd.f32 %v219, %v222
    %vm224 = vweird.f32 %v203
    %vm225 = vweird.f32 %v219
    %vm226 = vmor %vm224, %vm225
    %v227 = vsel %vm226, %v219, %v223
    %v228 = vand.u32 2147483647, %v203
    %vm229 = vcmp.eq.f32.partialorder %v228, 8.507059e+37
    %v230 = vand.u32 %v203, 2147483648
    %v231 = vor.u32 1.1754944e-38, %v230
    %v232 = vsel %vm229, %v231, %v227
    %v233 = vmul.f32 1.0, %v232
    %vm234 = vcmask 7168
    %235 = vst.msk [vmem:[%s5] sm:$0xff] %vm234, %v218
    %236 = vst.msk [vmem:[%s5 + $0x8] sm:$0xff] %vm234, %v233
    // Predicated region
    $region34: #{tpu_custom_call.1} parent=1 // pred_check
      _
    $region35: #{tpu_custom_call.1} parent=1 // pred_check_branch
      %238 = sbr.rel (0) target = $region37
    $region36: #{tpu_custom_call.1} parent=1 // pred_region
      _
    $region37: #{tpu_custom_call.1} parent=1 // pred_fallthru
      _
    // Predicated region
    $region38: #{tpu_custom_call.1} parent=1 // pred_check
      _
    $region39: #{tpu_custom_call.1} parent=1 // pred_check_branch
      %240 = sbr.rel (0) target = $region41
    $region40: #{tpu_custom_call.1} parent=1 // pred_region
      _
    $region41: #{tpu_custom_call.1} parent=1 // pred_fallthru
      _
    %241 = vsyncpa [#allocation4], 1
    %242 = vsyncpa [#allocation6], 1

</llo_original>
